<compile_context>
chip_gen: v7x
topology: tpu7x:2x2x1
jax: 0.10.0
libtpu: 0.0.40
codegen_flags: <defaults>
</compile_context>

<pallas_src>
import jax
import jax.numpy as jnp
from jax.experimental import pallas as pl
from jax.experimental.pallas import tpu as pltpu


# -----------------------------------------------------------------------------
# Primary: pure identity — no kernel launch, no HBM traffic.
# -----------------------------------------------------------------------------
def transformer_model_forward(x, dim_in=None, dim_out=None):
    """Pallas TransformerModel.forward (identity).

    dim_in / dim_out mirror the PyTorch __init__ signature but are unused,
    exactly as in the reference module.  The forward is `return x`, so the
    optimal implementation performs no work at all.
    """
    del dim_in, dim_out
    return x


# -----------------------------------------------------------------------------
# Aliased no-op kernel: only useful when the caller donates the input under jit
# (then the output aliases the input buffer and the body is a true no-op).
# -----------------------------------------------------------------------------
def _identity_alias_kernel(x_hbm_ref, o_hbm_ref):
    # Output aliases the input HBM buffer: the data is already in place.
    del x_hbm_ref, o_hbm_ref


def transformer_model_forward_aliased(x, dim_in=None, dim_out=None):
    """Identity via an aliased, empty pallas_call.

    Zero HBM traffic only when `x` is a donated buffer under jit; otherwise XLA
    inserts one defensive copy outside the kernel to satisfy the alias.
    """
    del dim_in, dim_out
    return pl.pallas_call(
        _identity_alias_kernel,
        out_shape=jax.ShapeDtypeStruct(x.shape, x.dtype),
        in_specs=[pl.BlockSpec(memory_space=pl.ANY)],
        out_specs=pl.BlockSpec(memory_space=pl.ANY),
        input_output_aliases={0: 0},
    )(x)


# -----------------------------------------------------------------------------
# Materializing variant: fresh output buffer via one direct HBM->HBM DMA.
# -----------------------------------------------------------------------------
def _dma_copy_kernel(x_hbm_ref, o_hbm_ref, copy_sem):
    cp = pltpu.make_async_copy(x_hbm_ref, o_hbm_ref, copy_sem)
    cp.start()
    cp.wait()


def transformer_model_forward_copy(x, dim_in=None, dim_out=None):
    """Identity forward that materializes a distinct output buffer.

    Single HBM->HBM DMA: no VMEM staging, no tiling constraints, shape/dtype
    agnostic, and already at the read+write HBM roofline on every TPU
    generation (v5e / v6e / v7x).
    """
    del dim_in, dim_out
    nbytes = int(x.size) * jnp.dtype(x.dtype).itemsize
    return pl.pallas_call(
        _dma_copy_kernel,
        out_shape=jax.ShapeDtypeStruct(x.shape, x.dtype),
        in_specs=[pl.BlockSpec(memory_space=pl.ANY)],
        out_specs=pl.BlockSpec(memory_space=pl.ANY),
        scratch_shapes=[pltpu.SemaphoreType.DMA(())],
        cost_estimate=pl.CostEstimate(
            flops=0, transcendentals=0, bytes_accessed=2 * nbytes),
    )(x)


if __name__ == "__main__":
    key = jax.random.PRNGKey(0)
    # Small NCHW input consistent with the training script's usage.
    x = jax.random.normal(key, (2, 4, 16, 16), dtype=jnp.float32)

    dim_in, dim_out = 16, 16  # accepted but unused, matching the reference

    # 1) Primary identity: no kernel launch, no HBM traffic.
    y = jax.block_until_ready(transformer_model_forward(x, dim_in, dim_out))
    assert y.shape == x.shape and y.dtype == x.dtype
    assert bool(jnp.array_equal(y, x))

    # 2) Aliased no-op pallas_call (exercises the kernel boundary).
    y_alias = jax.block_until_ready(
        transformer_model_forward_aliased(x, dim_in, dim_out))
    assert y_alias.shape == x.shape and y_alias.dtype == x.dtype
    assert bool(jnp.array_equal(y_alias, x))

    # 3) Materializing HBM->HBM DMA copy (fresh output buffer).
    y_copy = jax.block_until_ready(
        transformer_model_forward_copy(x, dim_in, dim_out))
    assert y_copy.shape == x.shape and y_copy.dtype == x.dtype
    assert bool(jnp.array_equal(y_copy, x))

    print("KERNEL_OK")
</pallas_src>

<mosaic_0001>
module attributes {stable_mosaic.version = 11 : i64} {
  func.func @_identity_alias_kernel(%arg0: memref<2x4x16x16xf32, #tpu.memory_space<any>>, %arg1: memref<2x4x16x16xf32, #tpu.memory_space<any>>) attributes {dimension_semantics = [], scalar_prefetch = 0 : i64, scratch_operands = 0 : i64, tpu.core_type = #tpu.core_type<tc>} {
    return
  }
}

</mosaic_0001>

<llo_original>
// kernel: tpu_custom_call.1
$region0: #{tpu_custom_call.1}
  #allocation0 [shape = 'u32[]', space=smem, size = 0x4, offset = 0x4, fixed_abs, tag = 'smem constant byte address 0x4 - core index']
  #allocation1 [shape = 'u32[144,128]{1,0:T(1,128)}', space=vmem, size = 0x12000, scoped, tag = 'internal scratch']
  %s0 = inlined_call_operand.hbm [shape: f32[2,4,16,16], index: 0, kind: input, shape index: {}, may-alias: {0,1}]
  %s1 = inlined_call_operand.hbm [shape: f32[2,4,16,16], index: 1, kind: output, shape index: {}, may-alias: {0,1}]
  %s2 = sld [smem:[#allocation0]]
  $region2: #{tpu_custom_call.1} parent=0
    _
  %s4 = ssub.s32 1, %s2
  %s5 = scalar_select 0, %s4, %s2

</llo_original>
